<compile_context>
chip_gen: v7x
topology: tpu7x:2x2x1
jax: 0.10.0
libtpu: 0.0.40
codegen_flags: <defaults>
</compile_context>

<pallas_src>
import functools

import jax
import jax.numpy as jnp
from jax.experimental import pallas as pl
from jax.experimental.pallas import tpu as pltpu


def _ce_label_smooth_kernel(logits_ref, targets_ref, out_ref, *, epsilon, n_total):
    """One batch tile: label-smoothed CE partial sum (no (TN,C) temporaries
    beyond `shifted` and one compare/select)."""
    i = pl.program_id(0)

    x = logits_ref[...].astype(jnp.float32)                   # (TN, C)
    t = targets_ref[...]                                       # (TN, 1) int32
    tn, c = x.shape

    # numerically-stable pieces of log_softmax(dim=1)
    m = jnp.max(x, axis=1, keepdims=True)                      # (TN, 1)
    shifted = x - m                                             # (TN, C)
    lse = jnp.log(jnp.sum(jnp.exp(shifted), axis=1, keepdims=True))  # (TN, 1)

    # masked gather of shifted[n, t_n] via iota compare (no scatter on TPU)
    cols = jax.lax.broadcasted_iota(jnp.int32, x.shape, 1)      # (TN, C)
    tgt_shifted = jnp.sum(jnp.where(cols == t, shifted, 0.0),
                          axis=1, keepdims=True)                # (TN, 1)
    row_sum = jnp.sum(shifted, axis=1, keepdims=True)           # (TN, 1)

    cf = jnp.float32(c)
    per_row = (-(1.0 - epsilon) * (tgt_shifted - lse)
               - (epsilon / cf) * (row_sum - cf * lse))         # (TN, 1)

    # mask padded rows of a ragged final tile (OOB block rows hold garbage)
    row_ids = i * tn + jax.lax.broadcasted_iota(jnp.int32, (tn, 1), 0)
    per_row = jnp.where(row_ids < n_total, per_row, 0.0)

    partial = jnp.sum(per_row)                                  # scalar, f32

    # lane-dense unmasked (8, 128) store of this tile's partial sum
    out_ref[...] = jnp.broadcast_to(jnp.reshape(partial, (1, 1)), out_ref.shape)


def _choose_tile_rows(n, c, itemsize):
    # Two pipeline buffers of the logits tile must fit v5e's 16 MiB default
    # scoped VMEM with headroom: 2 * TN * C * itemsize <= ~12 MiB.
    budget = 12 * 1024 * 1024
    rows = budget // (2 * max(c, 1) * itemsize)
    rows = max(16, (rows // 16) * 16)        # multiple of 16: bf16-tile friendly
    tn = min(512, rows)
    if n <= tn:
        return n                              # single block == full batch dim
    return tn


def cross_entropy_label_smooth(logits, targets, num_classes, epsilon=0.1,
                               tile_rows=None):
    """size_average=True forward pass; returns a scalar float32 loss.

    Pass logits in their native dtype (e.g. bf16): the kernel upcasts to f32
    internally, keeping HBM traffic at the input width.
    """
    n, c = logits.shape
    assert c == num_classes
    targets_col = targets.astype(jnp.int32).reshape(n, 1)

    tn = tile_rows if tile_rows is not None else _choose_tile_rows(
        n, c, logits.dtype.itemsize)
    tn = min(tn, n)
    num_tiles = pl.cdiv(n, tn)

    kernel = functools.partial(
        _ce_label_smooth_kernel, epsilon=float(epsilon), n_total=n
    )

    cost = pl.CostEstimate(
        flops=5 * n * c,
        transcendentals=n * c,
        bytes_accessed=(n * c * logits.dtype.itemsize + n * 4
                        + num_tiles * 8 * 128 * 4),
    )

    partials = pl.pallas_call(
        kernel,
        out_shape=jax.ShapeDtypeStruct((num_tiles * 8, 128), jnp.float32),
        grid_spec=pltpu.PrefetchScalarGridSpec(
            num_scalar_prefetch=0,
            grid=(num_tiles,),
            in_specs=[
                pl.BlockSpec((tn, c), lambda i: (i, 0)),
                pl.BlockSpec((tn, 1), lambda i: (i, 0)),
            ],
            out_specs=pl.BlockSpec((8, 128), lambda i: (i, 0)),
        ),
        compiler_params=pltpu.CompilerParams(
            dimension_semantics=("parallel",),
        ),
        cost_estimate=cost,
    )(logits, targets_col)

    # tiny cross-tile reduction in f32; divide by the *global* batch size
    tile_sums = partials.reshape(num_tiles, 8, 128)[:, 0, 0]
    return jnp.sum(tile_sums) / jnp.float32(n)


def _reference(logits, targets, num_classes, epsilon=0.1):
    log_probs = jax.nn.log_softmax(logits.astype(jnp.float32), axis=1)
    onehot = jax.nn.one_hot(targets, num_classes, dtype=jnp.float32)
    smoothed = (1.0 - epsilon) * onehot + epsilon / num_classes
    return (-smoothed * log_probs).mean(0).sum()


if __name__ == "__main__":
    num_classes = 16
    epsilon = 0.1
    key = jax.random.PRNGKey(0)

    # --- main check: single-tile path (batch=8, classes=16) ---
    k1, k2, k3, k4 = jax.random.split(key, 4)
    logits = jax.random.normal(k1, (8, num_classes), dtype=jnp.float32)
    targets = jax.random.randint(k2, (8,), 0, num_classes, dtype=jnp.int32)

    loss = cross_entropy_label_smooth(logits, targets, num_classes, epsilon)
    loss = jax.block_until_ready(loss)
    ref = _reference(logits, targets, num_classes, epsilon)
    assert jnp.allclose(loss, ref, rtol=1e-5, atol=1e-5), (loss, ref)

    # --- secondary check: multi-tile + ragged final tile (batch=20, TN=8) ---
    logits2 = jax.random.normal(k3, (20, num_classes), dtype=jnp.float32)
    targets2 = jax.random.randint(k4, (20,), 0, num_classes, dtype=jnp.int32)
    loss2 = cross_entropy_label_smooth(logits2, targets2, num_classes, epsilon,
                                       tile_rows=8)
    loss2 = jax.block_until_ready(loss2)
    ref2 = _reference(logits2, targets2, num_classes, epsilon)
    assert jnp.allclose(loss2, ref2, rtol=1e-5, atol=1e-5), (loss2, ref2)

    print("KERNEL_OK")
</pallas_src>

<mosaic_0001>
module attributes {stable_mosaic.version = 11 : i64} {
  func.func @_ce_label_smooth_kernel(%arg0: i32, %arg1: memref<8x16xf32, #tpu.memory_space<vmem>>, %arg2: memref<8x1xi32, #tpu.memory_space<vmem>>, %arg3: memref<8x128xf32, #tpu.memory_space<vmem>>) attributes {dimension_semantics = [#tpu.dimension_semantics<parallel>], iteration_bounds = array<i64: 1>, scalar_prefetch = 0 : i64, scratch_operands = 0 : i64, tpu.core_type = #tpu.core_type<tc>, window_params = [{transform_indices = @transform_0, window_bounds = array<i64: 8, 16>}, {transform_indices = @transform_1, window_bounds = array<i64: 8, 1>}, {transform_indices = @transform_2, window_bounds = array<i64: 8, 128>}]} {
    %c0 = arith.constant 0 : index
    %c0_0 = arith.constant 0 : index
    %0 = vector.load %arg1[%c0, %c0_0] : memref<8x16xf32, #tpu.memory_space<vmem>>, vector<8x16xf32>
    %c0_1 = arith.constant 0 : index
    %c0_2 = arith.constant 0 : index
    %1 = vector.load %arg2[%c0_1, %c0_2] : memref<8x1xi32, #tpu.memory_space<vmem>>, vector<8x1xi32>
    %cst = arith.constant dense<0xFF800000> : vector<8xf32>
    %2 = vector.multi_reduction <maximumf>, %0, %cst [1] : vector<8x16xf32> to vector<8xf32>
    %3 = vector.shape_cast %2 : vector<8xf32> to vector<8x1xf32>
    %4 = vector.broadcast %3 : vector<8x1xf32> to vector<8x16xf32>
    %5 = arith.subf %0, %4 : vector<8x16xf32>
    %6 = math.exp %5 : vector<8x16xf32>
    %cst_3 = arith.constant dense<0.000000e+00> : vector<8xf32>
    %7 = vector.multi_reduction <add>, %6, %cst_3 [1] : vector<8x16xf32> to vector<8xf32>
    %8 = vector.shape_cast %7 : vector<8xf32> to vector<8x1xf32>
    %9 = math.log %8 : vector<8x1xf32>
    %10 = tpu.iota {dimensions = array<i32: 1>} : vector<8x16xi32>
    %11 = vector.broadcast %1 : vector<8x1xi32> to vector<8x16xi32>
    %12 = arith.cmpi eq, %10, %11 : vector<8x16xi32>
    %cst_4 = arith.constant 0.000000e+00 : f32
    %13 = vector.broadcast %cst_4 : f32 to vector<8x16xf32>
    %14 = arith.select %12, %5, %13 : vector<8x16xi1>, vector<8x16xf32>
    %cst_5 = arith.constant dense<0.000000e+00> : vector<8xf32>
    %15 = vector.multi_reduction <add>, %14, %cst_5 [1] : vector<8x16xf32> to vector<8xf32>
    %16 = vector.shape_cast %15 : vector<8xf32> to vector<8x1xf32>
    %cst_6 = arith.constant dense<0.000000e+00> : vector<8xf32>
    %17 = vector.multi_reduction <add>, %5, %cst_6 [1] : vector<8x16xf32> to vector<8xf32>
    %18 = vector.shape_cast %17 : vector<8xf32> to vector<8x1xf32>
    %19 = arith.subf %16, %9 : vector<8x1xf32>
    %cst_7 = arith.constant -0.899999976 : f32
    %20 = vector.broadcast %cst_7 : f32 to vector<8x1xf32>
    %21 = arith.mulf %20, %19 : vector<8x1xf32>
    %cst_8 = arith.constant 1.000000e-01 : f32
    %cst_9 = arith.constant 1.600000e+01 : f32
    %22 = arith.divf %cst_8, %cst_9 : f32
    %cst_10 = arith.constant 1.600000e+01 : f32
    %23 = vector.broadcast %cst_10 : f32 to vector<8x1xf32>
    %24 = arith.mulf %23, %9 : vector<8x1xf32>
    %25 = arith.subf %18, %24 : vector<8x1xf32>
    %26 = vector.broadcast %22 : f32 to vector<8x1xf32>
    %27 = arith.mulf %26, %25 : vector<8x1xf32>
    %28 = arith.subf %21, %27 : vector<8x1xf32>
    %c8_i32 = arith.constant 8 : i32
    %29 = arith.muli %arg0, %c8_i32 : i32
    %30 = tpu.iota {dimensions = array<i32: 0>} : vector<8x1xi32>
    %31 = vector.broadcast %29 : i32 to vector<8x1xi32>
    %32 = arith.addi %31, %30 : vector<8x1xi32>
    %c8_i32_11 = arith.constant 8 : i32
    %33 = vector.broadcast %c8_i32_11 : i32 to vector<8x1xi32>
    %34 = arith.cmpi slt, %32, %33 : vector<8x1xi32>
    %cst_12 = arith.constant 0.000000e+00 : f32
    %35 = vector.broadcast %cst_12 : f32 to vector<8x1xf32>
    %36 = arith.select %34, %28, %35 : vector<8x1xi1>, vector<8x1xf32>
    %37 = vector.shape_cast %36 : vector<8x1xf32> to vector<1x8x1xf32>
    %cst_13 = arith.constant dense<0.000000e+00> : vector<1xf32>
    %38 = vector.multi_reduction <add>, %37, %cst_13 [1, 2] : vector<1x8x1xf32> to vector<1xf32>
    %39 = vector.shape_cast %38 : vector<1xf32> to vector<1x1x1xf32>
    %40 = vector.extract %39[0, 0, 0] : f32 from vector<1x1x1xf32>
    %41 = vector.broadcast %40 : f32 to vector<1x1xf32>
    %42 = vector.shape_cast %41 : vector<1x1xf32> to vector<1x1xf32>
    %43 = vector.broadcast %42 : vector<1x1xf32> to vector<8x128xf32>
    %c0_14 = arith.constant 0 : index
    %c0_15 = arith.constant 0 : index
    %44 = vector.load %arg3[%c0_14, %c0_15] : memref<8x128xf32, #tpu.memory_space<vmem>>, vector<8x128xf32>
    tpu.vector_store %arg3[%c0_14, %c0_15], %43 {strides = array<i32>} : memref<8x128xf32, #tpu.memory_space<vmem>>, vector<8x128xf32>,
    return
  }
  func.func @transform_0(%arg0: i32) -> (i32, i32) {
    %c0_i32 = arith.constant 0 : i32
    %c0_i32_0 = arith.constant 0 : i32
    return %arg0, %c0_i32 : i32, i32
  }
  func.func @transform_1(%arg0: i32) -> (i32, i32) {
    %c0_i32 = arith.constant 0 : i32
    %c0_i32_0 = arith.constant 0 : i32
    return %arg0, %c0_i32 : i32, i32
  }
  func.func @transform_2(%arg0: i32) -> (i32, i32) {
    %c0_i32 = arith.constant 0 : i32
    %c0_i32_0 = arith.constant 0 : i32
    return %arg0, %c0_i32 : i32, i32
  }
}

</mosaic_0001>

<llo_original>
// kernel: tpu_custom_call.1
$region0: #{tpu_custom_call.1}
  #allocation0 [shape = 'u32[]', space=smem, size = 0x4, offset = 0x4, fixed_abs, tag = 'smem constant byte address 0x4 - core index']
  #allocation1 [shape = 'u32[144,128]{1,0:T(1,128)}', space=vmem, size = 0x12000, scoped, tag = 'internal scratch']
  %s0 = inlined_call_operand.vmem [shape: f32[8,16], index: 0, kind: input, shape index: {}]
  %s1 = inlined_call_operand.vmem [shape: s32[8,1], index: 1, kind: input, shape index: {}]
  %s2 = inlined_call_operand.hbm [shape: f32[8,128], index: 2, kind: output, shape index: {}]
  %s3 = sld [smem:[#allocation0]]
  $region18: #{tpu_custom_call.1} parent=0
    _
  %s5 = ssub.s32 1, %s3
  %s6 = scalar_select 0, %s5, %s3
  $region1: #{tpu_custom_call.1} parent=0
    #allocation2 [shape = 'u8[4096]{0}', space=vmem, size = 0x1000, scoped, tag = 'output window, operand 0, single buffered']
    #allocation3 [shape = 's32[1]{0}', space=sflag, size = 0x4, scoped, tag = 'scoped memory for tpu_custom_call.1']
    %7 = vsyncpa [#allocation3], 0
    // Predicated region
    $region2: #{tpu_custom_call.1} parent=1 // pred_check
      _
    $region3: #{tpu_custom_call.1} parent=1 // pred_check_branch
      %9 = sbr.rel (0) target = $region5
    $region4: #{tpu_custom_call.1} parent=1 // pred_region
      _
    $region5: #{tpu_custom_call.1} parent=1 // pred_fallthru
      _
    // Predicated region
    $region6: #{tpu_custom_call.1} parent=1 // pred_check
      _
    $region7: #{tpu_custom_call.1} parent=1 // pred_check_branch
      %11 = sbr.rel (0) target = $region9
    $region8: #{tpu_custom_call.1} parent=1 // pred_region
      _
    $region9: #{tpu_custom_call.1} parent=1 // pred_fallthru
      _
    %v12 = vld [vmem:[%s0] sm:$0xff]
    %v13 = vld [vmem:[%s1] sm:$0xff]
    %vm14 = vcmask 130048
    %v15 = vsel %vm14, %v12, -inf
    %16 = vmax.xlane.f32.xlu0 %v15
    %v17 = vpop.xlane.xlu0 %16
    %v18 = vsub.f32 %v12, %v17
    %v19 = vmul.f32 %v18, 1.442695
    %v20 = vpow.pop %v19
    %v21 = vsel %vm14, %v20, 0.0
    %22 = vadd.xlane.f32.xlu0 %v21
    %v23 = vpop.xlane.xlu0 %22
    %v24 = vlog2.pop %v23
    %v25 = vmul.f32 %v24, 0.6931472
    %v26 = vlaneseq
    %v27 = vand.u32 %v26, 127
    %28 = vset.pattern.permute.xlu0 0
    %29 = vperm.xlu0 %28, %v13
    %v30 = vpop.permute.xlu0 %29
    %vm31 = vcmp.eq.s32.totalorder %v27, %v30
    %v32 = vsel %vm31, %v18, 0.0
    %v33 = vsel %vm14, %v32, 0.0
    %34 = vadd.xlane.f32.xlu0 %v33
    %v35 = vpop.xlane.xlu0 %34
    %v36 = vsel %vm14, %v18, 0.0
    %37 = vadd.xlane.f32.xlu0 %v36
    %v38 = vpop.xlane.xlu0 %37
    %v39 = vsub.f32 %v35, %v25
    %v40 = vmul.f32 %v39, -0.9
    %v41 = vmul.f32 %v25, 16.0
    %v42 = vsub.f32 %v38, %v41
    %v43 = vmul.f32 %v42, 0.00625
    %v44 = vsub.f32 %v40, %v43
    %s45 = smul.u32 0, 8
    %v46 = vlaneseq
    %v47 = vshrl.u32 %v46, 7
    %v48 = vstv %s45
    %v49 = vadd.s32 %v48, %v47
    %vm50 = vcmp.lt.s32.totalorder %v49, 8
    %v51 = vsel %vm50, %v44, 0.0
    %vm52 = vcmask 7168
    %v53 = vsel %vm52, %v51, 0.0
    %54 = vadd.xlane.f32.xlu0 %v53
    %v55 = vpop.xlane.xlu0 %54
    %v56 = vrot.slane %v55, 4
    %v57 = vadd.f32 %v55, %v56
    %v58 = vrot.slane %v57, 2
    %v59 = vadd.f32 %v57, %v58
    %v60 = vrot.slane %v59, 1
    %v61 = vadd.f32 %v59, %v60
    %s62 = vtos %v61
    %v63 = vstv %s62
    %64 = vst [vmem:[#allocation2] sm:$0xff] %v63
    // Predicated region
    $region10: #{tpu_custom_call.1} parent=1 // pred_check
      _
    $region11: #{tpu_custom_call.1} parent=1 // pred_check_branch
      %66 = sbr.rel (0) target = $region13
    $region12: #{tpu_custom_call.1} parent=1 // pred_region
      %s68 = ssub.s32 128, 128
      %69 = vsyncadd [#allocation3], %s68
      %s71 = sshll.u32 [#allocation2], 4
      %s72 = int_to_ptr.vmem [resolvable:$true] %s71
      %74 = dma.vmem_to_hbm [thread:$0]  %s72, 128, %s2, [#allocation3]
    $region13: #{tpu_custom_call.1} parent=1 // pred_fallthru
      _
    // Predicated region
    $region14: #{tpu_custom_call.1} parent=1 // pred_check
      _
    $region15: #{tpu_custom_call.1} parent=1 // pred_check_branch
      %76 = sbr.rel (0) target = $region17
    $region16: #{tpu_custom_call.1} parent=1 // pred_region
      %77 = dma.done [#allocation3], 128
    $region17: #{tpu_custom_call.1} parent=1 // pred_fallthru
      _
    %78 = vsyncpa [#allocation3], 1

</llo_original>
